<compile_context>
chip_gen: v7x
topology: tpu7x:2x2x1
jax: 0.10.0
libtpu: 0.0.40
codegen_flags: <defaults>
</compile_context>

<pallas_src>
import functools

import jax
import jax.numpy as jnp
from jax import lax
from jax.experimental import pallas as pl
from jax.experimental.pallas import tpu as pltpu


# ----------------------------------------------------------------------------
# Kernels
# ----------------------------------------------------------------------------
def _grn_fused_kernel(x_ref, gamma_ref, beta_ref, o_ref, *, eps, chunk):
    """Single-pass GRN on a (bb, C, T) batch block. T chunked to bound f32 temps."""
    T = x_ref.shape[-1]
    f32 = jnp.float32

    # Pass 1: sum of squares over time (lanes), chunk-sized f32 temporaries.
    acc = None
    for c0 in range(0, T, chunk):
        c1 = min(c0 + chunk, T)
        xs = x_ref[:, :, c0:c1].astype(f32)
        part = jnp.sum(xs * xs, axis=-1, keepdims=True)
        acc = part if acc is None else acc + part

    gx = jnp.sqrt(acc)                                        # (bb, C, 1)
    nx = gx / (jnp.mean(gx, axis=1, keepdims=True) + eps)     # (bb, C, 1)
    # Folded algebra: gamma*(x*nx) + beta + x == x*(gamma*nx + 1) + beta
    scale = gamma_ref[...].astype(f32) * nx + 1.0             # (bb, C, 1)
    beta = beta_ref[...].astype(f32)                          # (1,  C, 1)

    # Pass 2: apply, chunked; f32 math, single cast at the store.
    for c0 in range(0, T, chunk):
        c1 = min(c0 + chunk, T)
        xs = x_ref[:, :, c0:c1].astype(f32)
        o_ref[:, :, c0:c1] = (xs * scale + beta).astype(o_ref.dtype)


def _grn_sumsq_kernel(x_ref, ss_ref, *, t_total, t_chunk):
    """Two-pass fallback, pass A: per-(b, c) sum of squares; ss_ref is the accumulator."""
    t = pl.program_id(1)

    @pl.when(t == 0)
    def _():
        ss_ref[...] = jnp.zeros_like(ss_ref)

    x = x_ref[...].astype(jnp.float32)
    if t_total % t_chunk != 0:
        # Mask garbage lanes of the partial last T chunk (exact for all other chunks).
        lane = lax.broadcasted_iota(jnp.int32, x.shape, 2)
        x = jnp.where(t * t_chunk + lane < t_total, x, 0.0)
    ss_ref[...] += jnp.sum(x * x, axis=-1, keepdims=True)


def _grn_apply_kernel(x_ref, scale_ref, beta_ref, o_ref):
    """Two-pass fallback, pass B: y = x * scale + beta."""
    xf = x_ref[...].astype(jnp.float32)
    y = xf * scale_ref[...].astype(jnp.float32) + beta_ref[...].astype(jnp.float32)
    o_ref[...] = y.astype(o_ref.dtype)


# ----------------------------------------------------------------------------
# Sizing helpers
# ----------------------------------------------------------------------------
def _vmem_limit_bytes():
    """Generation-aware scoped-VMEM limit: ~48 MiB on 64 MiB parts (v7x),
    ~100 MiB on 128 MiB parts (v5e/v6e). Conservative default if query fails."""
    cap = 64 << 20
    try:
        cap = int(pltpu.get_tpu_info().vmem_capacity_bytes)
    except Exception:
        pass
    return (48 << 20) if cap <= (64 << 20) else (100 << 20)


def _pick_block_batch(B, per_batch_bytes, target_bytes):
    """Pick the batch-block size. Grid uses cdiv(B, bb); the partial last block is
    computed on garbage rows and discarded by the masked output store."""
    max_bb = max(1, min(B, int(target_bytes // max(per_batch_bytes, 1))))
    if B <= 1 or max_bb <= 1:
        return 1
    best_score, best_bb = None, 1
    for bb in range(1, max_bb + 1):
        steps = -(-B // bb)
        if steps < 2:          # keep >=2 steps: pipeline steady state / dual TC
            continue
        waste = steps * bb - B
        # Prefer an even step count (v7x dual-TC balance), then >=4 steps,
        # then minimal partial-block waste, then the largest tile.
        score = (steps % 2 == 0, steps >= 4, -waste, bb)
        if best_score is None or score > best_score:
            best_score, best_bb = score, bb
    return best_bb


# ----------------------------------------------------------------------------
# Wrapper
# ----------------------------------------------------------------------------
def grn(x, gamma, beta, eps=1e-6, *, _force_two_pass=False):
    """GRN forward. x: (B, C, T); gamma, beta: (1, C, 1)."""
    B, C, T = x.shape
    assert gamma.shape == (1, C, 1) and beta.shape == (1, C, 1)

    itemsize = jnp.dtype(x.dtype).itemsize
    out_dtype = x.dtype

    limit = _vmem_limit_bytes()
    budget = limit - (8 << 20)            # headroom for chunk temporaries / scratch
    max_tile = max(1 << 20, budget // 6)  # in+out double-buffered (4x) + f32 temps
    per_batch = C * T * itemsize

    # ---------------- Fused single-pass path ----------------
    if per_batch <= max_tile and not _force_two_pass:
        target_tile = min(8 << 20, max_tile)
        bb = _pick_block_batch(B, per_batch, target_tile)
        tile = bb * per_batch
        vmem_limit = int(min(limit, max(16 << 20, 6 * tile + (8 << 20))))
        # Lane chunk for the in-kernel reduce/apply: multiple of 128, <= ~32 chunks.
        chunk = T if T <= 512 else max(512, ((-(-T // 32) + 127) // 128) * 128)

        kernel = functools.partial(_grn_fused_kernel, eps=eps, chunk=chunk)
        return pl.pallas_call(
            kernel,
            out_shape=jax.ShapeDtypeStruct((B, C, T), out_dtype),
            grid_spec=pltpu.PrefetchScalarGridSpec(
                num_scalar_prefetch=0,
                grid=(pl.cdiv(B, bb),),
                in_specs=[
                    pl.BlockSpec((bb, C, T), lambda b: (b, 0, 0)),
                    pl.BlockSpec((1, C, 1), lambda b: (0, 0, 0)),
                    pl.BlockSpec((1, C, 1), lambda b: (0, 0, 0)),
                ],
                out_specs=pl.BlockSpec((bb, C, T), lambda b: (b, 0, 0)),
            ),
            compiler_params=pltpu.CompilerParams(
                dimension_semantics=("parallel",),
                vmem_limit_bytes=vmem_limit,
            ),
        )(x, gamma, beta)

    # ---------------- Two-pass fallback (long-T / large-C shapes) ----------------
    # Pass A: per-(b, c) sum of squares, T split across an 'arbitrary' grid axis
    # with the (1, C, 1) output block acting as the accumulator. Costs 3N HBM
    # traffic but scales to shapes that can't fit a (1, C, T) tile in VMEM.
    if T <= 128:
        t_chunk = T
    else:
        t_chunk = max(128, (int(max_tile) // (C * itemsize)) // 128 * 128)
        t_chunk = min(t_chunk, (T // 128) * 128)
    nt = pl.cdiv(T, t_chunk)
    tile = C * t_chunk * itemsize
    vmem_limit = int(min(limit, max(16 << 20, 6 * tile + (8 << 20))))

    sumsq = pl.pallas_call(
        functools.partial(_grn_sumsq_kernel, t_total=T, t_chunk=t_chunk),
        out_shape=jax.ShapeDtypeStruct((B, C, 1), jnp.float32),
        grid_spec=pltpu.PrefetchScalarGridSpec(
            num_scalar_prefetch=0,
            grid=(B, nt),
            in_specs=[pl.BlockSpec((1, C, t_chunk), lambda b, t: (b, 0, t))],
            out_specs=pl.BlockSpec((1, C, 1), lambda b, t: (b, 0, 0)),
        ),
        compiler_params=pltpu.CompilerParams(
            dimension_semantics=("parallel", "arbitrary"),
            vmem_limit_bytes=vmem_limit,
        ),
    )(x)

    gx = jnp.sqrt(sumsq)                                      # (B, C, 1) f32, tiny
    nx = gx / (jnp.mean(gx, axis=1, keepdims=True) + eps)
    scale = gamma.astype(jnp.float32) * nx + 1.0              # (B, C, 1) f32

    return pl.pallas_call(
        _grn_apply_kernel,
        out_shape=jax.ShapeDtypeStruct((B, C, T), out_dtype),
        grid_spec=pltpu.PrefetchScalarGridSpec(
            num_scalar_prefetch=0,
            grid=(B, nt),
            in_specs=[
                pl.BlockSpec((1, C, t_chunk), lambda b, t: (b, 0, t)),
                pl.BlockSpec((1, C, 1), lambda b, t: (b, 0, 0)),
                pl.BlockSpec((1, C, 1), lambda b, t: (0, 0, 0)),
            ],
            out_specs=pl.BlockSpec((1, C, t_chunk), lambda b, t: (b, 0, t)),
        ),
        compiler_params=pltpu.CompilerParams(
            dimension_semantics=("parallel", "parallel"),
            vmem_limit_bytes=vmem_limit,
        ),
    )(x, scale, beta)


def grn_ref(x, gamma, beta, eps=1e-6):
    """Pure-JAX reference mirroring the PyTorch forward."""
    gx = jnp.sqrt(jnp.sum(x * x, axis=2, keepdims=True))
    nx = gx / (jnp.mean(gx, axis=1, keepdims=True) + eps)
    return gamma * (x * nx) + beta + x


if __name__ == "__main__":
    key = jax.random.PRNGKey(0)
    kx, kg, kb, kx2 = jax.random.split(key, 4)

    # Small NCT shapes consistent with the module. T=192 exercises the masked
    # tail store (no host-side padding anymore).
    B, C, T = 4, 8, 192
    x = jax.random.normal(kx, (B, C, T), dtype=jnp.float32)
    # Module __init__ uses zeros; use small deterministic values so the
    # gamma/beta path is actually exercised (zeros would make y == x).
    gamma = 0.1 * jax.random.normal(kg, (1, C, 1), dtype=jnp.float32)
    beta = 0.1 * jax.random.normal(kb, (1, C, 1), dtype=jnp.float32)

    # Case 1: fused path.
    y = grn(x, gamma, beta)
    jax.block_until_ready(y)
    assert jnp.allclose(y, grn_ref(x, gamma, beta), atol=1e-5, rtol=1e-5), "fused mismatch"

    # Case 2: odd batch -> cdiv grid with a partial (discarded) last batch block.
    x3 = jax.random.normal(kx2, (3, C, T), dtype=jnp.float32)
    y3 = grn(x3, gamma, beta)
    jax.block_until_ready(y3)
    assert jnp.allclose(y3, grn_ref(x3, gamma, beta), atol=1e-5, rtol=1e-5), "partial-block mismatch"

    # Case 3: two-pass fallback path (the path taken by long-T / large-C shapes).
    y2 = grn(x, gamma, beta, _force_two_pass=True)
    jax.block_until_ready(y2)
    assert jnp.allclose(y2, grn_ref(x, gamma, beta), atol=1e-5, rtol=1e-5), "two-pass mismatch"

    print("KERNEL_OK")
</pallas_src>

<mosaic_0001>
module attributes {stable_mosaic.version = 11 : i64} {
  func.func @_grn_fused_kernel(%arg0: i32, %arg1: memref<1x8x192xf32, #tpu.memory_space<vmem>>, %arg2: memref<1x8x1xf32, #tpu.memory_space<vmem>>, %arg3: memref<1x8x1xf32, #tpu.memory_space<vmem>>, %arg4: memref<1x8x192xf32, #tpu.memory_space<vmem>>) attributes {dimension_semantics = [#tpu.dimension_semantics<parallel>], iteration_bounds = array<i64: 4>, scalar_prefetch = 0 : i64, scratch_operands = 0 : i64, tpu.core_type = #tpu.core_type<tc>, window_params = [{transform_indices = @transform_0, window_bounds = array<i64: 1, 8, 192>}, {pipeline_mode = #tpu.pipeline_mode<synchronous>, transform_indices = @transform_1, window_bounds = array<i64: 1, 8, 1>}, {pipeline_mode = #tpu.pipeline_mode<synchronous>, transform_indices = @transform_2, window_bounds = array<i64: 1, 8, 1>}, {transform_indices = @transform_3, window_bounds = array<i64: 1, 8, 192>}]} {
    %c0 = arith.constant 0 : index
    %c0_0 = arith.constant 0 : index
    %c0_1 = arith.constant 0 : index
    %0 = vector.load %arg1[%c0, %c0_0, %c0_1] : memref<1x8x192xf32, #tpu.memory_space<vmem>>, vector<1x8x192xf32>
    %1 = arith.mulf %0, %0 : vector<1x8x192xf32>
    %cst = arith.constant dense<0.000000e+00> : vector<1x8xf32>
    %2 = vector.multi_reduction <add>, %1, %cst [2] : vector<1x8x192xf32> to vector<1x8xf32>
    %3 = vector.shape_cast %2 : vector<1x8xf32> to vector<1x8x1xf32>
    %4 = math.sqrt %3 : vector<1x8x1xf32>
    %cst_2 = arith.constant dense<0.000000e+00> : vector<1x1xf32>
    %5 = vector.multi_reduction <add>, %4, %cst_2 [1] : vector<1x8x1xf32> to vector<1x1xf32>
    %6 = vector.shape_cast %5 : vector<1x1xf32> to vector<1x1x1xf32>
    %cst_3 = arith.constant 8.000000e+00 : f32
    %7 = vector.broadcast %cst_3 : f32 to vector<1x1x1xf32>
    %8 = arith.divf %6, %7 : vector<1x1x1xf32>
    %cst_4 = arith.constant 9.99999997E-7 : f32
    %9 = vector.broadcast %cst_4 : f32 to vector<1x1x1xf32>
    %10 = arith.addf %8, %9 : vector<1x1x1xf32>
    %11 = vector.broadcast %10 : vector<1x1x1xf32> to vector<1x8x1xf32>
    %12 = arith.divf %4, %11 : vector<1x8x1xf32>
    %c0_5 = arith.constant 0 : index
    %c0_6 = arith.constant 0 : index
    %c0_7 = arith.constant 0 : index
    %13 = vector.load %arg2[%c0_5, %c0_6, %c0_7] : memref<1x8x1xf32, #tpu.memory_space<vmem>>, vector<1x8x1xf32>
    %14 = arith.mulf %13, %12 : vector<1x8x1xf32>
    %cst_8 = arith.constant 1.000000e+00 : f32
    %15 = vector.broadcast %cst_8 : f32 to vector<1x8x1xf32>
    %16 = arith.addf %14, %15 : vector<1x8x1xf32>
    %c0_9 = arith.constant 0 : index
    %c0_10 = arith.constant 0 : index
    %c0_11 = arith.constant 0 : index
    %17 = vector.load %arg3[%c0_9, %c0_10, %c0_11] : memref<1x8x1xf32, #tpu.memory_space<vmem>>, vector<1x8x1xf32>
    %c0_12 = arith.constant 0 : index
    %c0_13 = arith.constant 0 : index
    %c0_14 = arith.constant 0 : index
    %18 = vector.load %arg1[%c0_12, %c0_13, %c0_14] : memref<1x8x192xf32, #tpu.memory_space<vmem>>, vector<1x8x192xf32>
    %19 = vector.broadcast %16 : vector<1x8x1xf32> to vector<1x8x192xf32>
    %20 = arith.mulf %18, %19 : vector<1x8x192xf32>
    %21 = vector.broadcast %17 : vector<1x8x1xf32> to vector<1x8x192xf32>
    %22 = arith.addf %20, %21 : vector<1x8x192xf32>
    %c0_15 = arith.constant 0 : index
    %c0_16 = arith.constant 0 : index
    %c0_17 = arith.constant 0 : index
    %23 = vector.load %arg4[%c0_15, %c0_16, %c0_17] : memref<1x8x192xf32, #tpu.memory_space<vmem>>, vector<1x8x192xf32>
    tpu.vector_store %arg4[%c0_15, %c0_16, %c0_17], %22 {strides = array<i32>} : memref<1x8x192xf32, #tpu.memory_space<vmem>>, vector<1x8x192xf32>,
    return
  }
  func.func @transform_0(%arg0: i32) -> (i32, i32, i32) {
    %c0_i32 = arith.constant 0 : i32
    %c0_i32_0 = arith.constant 0 : i32
    %c0_i32_1 = arith.constant 0 : i32
    return %arg0, %c0_i32, %c0_i32_0 : i32, i32, i32
  }
  func.func @transform_1(%arg0: i32) -> (i32, i32, i32) {
    %c0_i32 = arith.constant 0 : i32
    %c0_i32_0 = arith.constant 0 : i32
    %c0_i32_1 = arith.constant 0 : i32
    %c0_i32_2 = arith.constant 0 : i32
    return %c0_i32, %c0_i32_0, %c0_i32_1 : i32, i32, i32
  }
  func.func @transform_2(%arg0: i32) -> (i32, i32, i32) {
    %c0_i32 = arith.constant 0 : i32
    %c0_i32_0 = arith.constant 0 : i32
    %c0_i32_1 = arith.constant 0 : i32
    %c0_i32_2 = arith.constant 0 : i32
    return %c0_i32, %c0_i32_0, %c0_i32_1 : i32, i32, i32
  }
  func.func @transform_3(%arg0: i32) -> (i32, i32, i32) {
    %c0_i32 = arith.constant 0 : i32
    %c0_i32_0 = arith.constant 0 : i32
    %c0_i32_1 = arith.constant 0 : i32
    return %arg0, %c0_i32, %c0_i32_0 : i32, i32, i32
  }
}

</mosaic_0001>

<llo_original>
// kernel: tpu_custom_call.1
$region0: #{tpu_custom_call.1}
  #allocation0 [shape = 'u32[]', space=smem, size = 0x4, offset = 0x4, fixed_abs, tag = 'smem constant byte address 0x4 - core index']
  #allocation1 [shape = 'u32[144,128]{1,0:T(1,128)}', space=vmem, size = 0x12000, scoped, tag = 'internal scratch']
  %s0 = inlined_call_operand.hbm [shape: f32[4,8,192], index: 0, kind: input, shape index: {}]
  %s1 = inlined_call_operand.vmem [shape: f32[1,8,1], index: 1, kind: input, shape index: {}]
  %s2 = inlined_call_operand.vmem [shape: f32[1,8,1], index: 2, kind: input, shape index: {}]
  %s3 = inlined_call_operand.hbm [shape: f32[4,8,192], index: 3, kind: output, shape index: {}]
  %s4 = sld [smem:[#allocation0]]
  $region49: #{tpu_custom_call.1} parent=0
    _
  %s6 = ssub.s32 1, %s4
  %s7 = scalar_select 0, %s6, %s4
  $region1: #{tpu_custom_call.1} parent=0
    #allocation2 [shape = 'u8[16384]{0}', space=vmem, size = 0x4000, scoped, tag = 'input window, operand 0']
    #allocation3 [shape = 's32[2]{0}', space=sflag, size = 0x8, scoped, tag = 'scoped memory for tpu_custom_call.1']
    #allocation4 [shape = 's32[2]{0}', space=sflag, size = 0x8, scoped, tag = 'scoped memory for tpu_custom_call.1']
    #allocation5 [shape = 'u8[16384]{0}', space=vmem, size = 0x4000, scoped, tag = 'output window, operand 0']
    %8 = vsyncpa [#allocation3], 0
    %s9 = scalar_lea.sflag [#allocation3], 1
    %10 = vsyncpa %s9, 0
    %11 = vsyncpa [#allocation4], 0
    %s12 = scalar_lea.sflag [#allocation4], 1
    %13 = vsyncpa %s12, 0
    loop: start=0, step=1, limit=6
    $region2: #{tpu_custom_call.1} parent=1 // loop_pre_header
      _
    $region3: #{tpu_custom_call.1} parent=1 // loop_header
      %s15 = sphi 0, %s19
      %p16 = scmp.ge.s32.totalorder %s15, 6
      %s25 = sphi 0, %s27
      %s28 = sphi 0, %s25
      %s29 = sphi 0, %s28
      %s45 = sphi 0, %s29
      %s49 = sphi 0, %s49
      %s51 = sphi 0, %s49
      %s52 = sphi 0, %s51
      %s66 = sphi 0, %s52
      %s70 = sphi 0, %s70
      %s72 = sphi 0, %s70
      %s73 = sphi 0, %s72
      %s87 = sphi 0, %s73
      %s93 = sphi 0, %s95
      %s96 = sphi 0, %s93
      %s97 = sphi 0, %s96
      %s113 = sphi 0, %s97
    $region4: #{tpu_custom_call.1} parent=1 // loop_header_branch
      %18 = sbr.rel (%p16) target = $region8
    $region5: #{tpu_custom_call.1} parent=1 // loop_body
      %s20 = ssub.s32 %s15, 1
      %s21 = ssub.s32 %s15, 2
      %s22 = sadd.s32 %s15, 1
      %s23 = ssub.s32 %s15, %s22
      %p24 = scmp.eq.s32.totalorder %s23, 0
      %s26 = sadd.s32 %s25, 1
      %s27 = scalar_select %p24, %s25, %s26
      %p30 = pneg %p24
      %p31 = scmp.eq.s32.totalorder %s15, 3
      %p32 = por %p30, %p31
      %p33 = scmp.ne.s32.totalorder %s25, %s28
      %p34 = scmp.eq.s32.totalorder %s15, 0
      %p35 = por %p33, %p34
      %p36 = scmp.ne.s32.totalorder %s25, %s28
      %p37 = scmp.eq.s32.totalorder %s20, 3
      %p38 = por %p36, %p37
      %p39 = scmp.ne.s32.totalorder %s28, %s29
      %p40 = scmp.eq.s32.totalorder %s20, 0
      %p41 = por %p39, %p40
      %p42 = scmp.ne.s32.totalorder %s28, %s29
      %p43 = scmp.eq.s32.totalorder %s21, 3
      %p44 = por %p42, %p43
      %p46 = scmp.ne.s32.totalorder %s29, %s45
      %p47 = scmp.eq.s32.totalorder %s21, 0
      %p48 = por %p46, %p47
      %s50 = sadd.s32 %s49, 1
      %p53 = scmp.eq.s32.totalorder %s15, 3
      %p54 = scmp.ne.s32.totalorder %s49, %s51
      %p55 = scmp.eq.s32.totalorder %s15, 0
      %p56 = por %p54, %p55
      %p57 = scmp.ne.s32.totalorder %s49, %s51
      %p58 = scmp.eq.s32.totalorder %s20, 3
      %p59 = por %p57, %p58
      %p60 = scmp.ne.s32.totalorder %s51, %s52
      %p61 = scmp.eq.s32.totalorder %s20, 0
      %p62 = por %p60, %p61
      %p63 = scmp.ne.s32.totalorder %s51, %s52
      %p64 = scmp.eq.s32.totalorder %s21, 3
      %p65 = por %p63, %p64
      %p67 = scmp.ne.s32.totalorder %s52, %s66
      %p68 = scmp.eq.s32.totalorder %s21, 0
      %p69 = por %p67, %p68
      %s71 = sadd.s32 %s70, 1
      %p74 = scmp.eq.s32.totalorder %s15, 3
      %p75 = scmp.ne.s32.totalorder %s70, %s72
      %p76 = scmp.eq.s32.totalorder %s15, 0
      %p77 = por %p75, %p76
      %p78 = scmp.ne.s32.totalorder %s70, %s72
      %p79 = scmp.eq.s32.totalorder %s20, 3
      %p80 = por %p78, %p79
      %p81 = scmp.ne.s32.totalorder %s72, %s73
      %p82 = scmp.eq.s32.totalorder %s20, 0
      %p83 = por %p81, %p82
      %p84 = scmp.ne.s32.totalorder %s72, %s73
      %p85 = scmp.eq.s32.totalorder %s21, 3
      %p86 = por %p84, %p85
      %p88 = scmp.ne.s32.totalorder %s73, %s87
      %p89 = scmp.eq.s32.totalorder %s21, 0
      %p90 = por %p88, %p89
      %s91 = ssub.s32 %s15, %s22
      %p92 = scmp.eq.s32.totalorder %s91, 0
      %s94 = sadd.s32 %s93, 1
      %s95 = scalar_select %p92, %s93, %s94
      %p98 = pneg %p92
      %p99 = scmp.eq.s32.totalorder %s15, 3
      %p100 = por %p98, %p99
      %p101 = scmp.ne.s32.totalorder %s93, %s96
      %p102 = scmp.eq.s32.totalorder %s15, 0
      %p103 = por %p101, %p102
      %p104 = scmp.ne.s32.totalorder %s93, %s96
      %p105 = scmp.eq.s32.totalorder %s20, 3
      %p106 = por %p104, %p105
      %p107 = scmp.ne.s32.totalorder %s96, %s97
      %p108 = scmp.eq.s32.totalorder %s20, 0
      %p109 = por %p107, %p108
      %p110 = scmp.ne.s32.totalorder %s96, %s97
      %p111 = scmp.eq.s32.totalorder %s21, 3
      %p112 = por %p110, %p111
      %p114 = scmp.ne.s32.totalorder %s97, %s113
      %p115 = scmp.eq.s32.totalorder %s21, 0
      %p116 = por %p114, %p115
      %p117 = scmp.le.s32.totalorder 1, %s15
      %p118 = scmp.lt.s32.totalorder %s15, 5
      %p119 = pnand %p117, %p118
      %p120 = pneg %p119
      // Predicated region
      $region9: #{tpu_custom_call.1} parent=5 // pred_check
        _
      $region10: #{tpu_custom_call.1} parent=5 // pred_check_branch
        %122 = sbr.rel (%p119) target = $region12
      $region11: #{tpu_custom_call.1} parent=5 // pred_region
        %s123 = ssub.s32 %s15, 1
        // Predicated region
        $region13: #{tpu_custom_call.1} parent=11 // pred_check
          %p124 = pneg %p62
        $region14: #{tpu_custom_call.1} parent=11 // pred_check_branch
          %126 = sbr.rel (%p124) target = $region16
        $region15: #{tpu_custom_call.1} parent=11 // pred_region
          _
        $region16: #{tpu_custom_call.1} parent=11 // pred_fallthru
          _
        // Predicated region
        $region17: #{tpu_custom_call.1} parent=11 // pred_check
          %p127 = pneg %p83
        $region18: #{tpu_custom_call.1} parent=11 // pred_check_branch
          %129 = sbr.rel (%p127) target = $region20
        $region19: #{tpu_custom_call.1} parent=11 // pred_region
          _
        $region20: #{tpu_custom_call.1} parent=11 // pred_fallthru
          _
      $region12: #{tpu_custom_call.1} parent=5 // pred_fallthru
        _
      %p130 = scmp.lt.s32.totalorder %s15, 4
      // Predicated region
      $region21: #{tpu_custom_call.1} parent=5 // pred_check
        %p131 = pneg %p130
      $region22: #{tpu_custom_call.1} parent=5 // pred_check_branch
        %133 = sbr.rel (%p131) target = $region24
      $region23: #{tpu_custom_call.1} parent=5 // pred_region
        // Predicated region
        $region25: #{tpu_custom_call.1} parent=23 // pred_check
          %p134 = pneg %p35
        $region26: #{tpu_custom_call.1} parent=23 // pred_check_branch
          %136 = sbr.rel (%p134) target = $region28
        $region27: #{tpu_custom_call.1} parent=23 // pred_region
          %s137 = sand.u32 %s25, 1
          %s138 = scalar_lea.sflag [#allocation3], %s137
          %s139 = sand.u32 %s25, 1
          %s140 = smul.addr %s139, 16
          %s141 = scalar_lea.vmem [#allocation2], %s140
          %s143 = ssub.s32 256, 256
          %144 = vsyncadd %s138, %s143
          %s145 = smul.addr %s15, 2
          %s146 = smul.addr %s145, 128
          %s147 = scalar_lea.hbm %s0, %s146
          %s149 = sshll.u32 %s141, 4
          %s150 = int_to_ptr.vmem [resolvable:$true] %s149
          %152 = dma.hbm_to_vmem [thread:$0]  %s147, 256, %s150, %s138
        $region28: #{tpu_custom_call.1} parent=23 // pred_fallthru
          _
      $region24: #{tpu_custom_call.1} parent=5 // pred_fallthru
        _
      %p153 = scmp.le.s32.totalorder 1, %s15
      %p154 = scmp.lt.s32.totalorder %s15, 5
      %p155 = pnand %p153, %p154
      %p156 = pneg %p155
      // Predicated region
      $region29: #{tpu_custom_call.1} parent=5 // pred_check
        _
      $region30: #{tpu_custom_call.1} parent=5 // pred_check_branch
        %158 = sbr.rel (%p155) target = $region32
      $region31: #{tpu_custom_call.1} parent=5 // pred_region
        %s159 = ssub.s32 %s15, 1
        %s160 = sand.u32 %s28, 1
        %s161 = scalar_lea.sflag [#allocation3], %s160
        %s162 = sand.u32 %s28, 1
        %s163 = smul.addr %s162, 16
        %s164 = scalar_lea.vmem [#allocation2], %s163
        // Predicated region
        $region33: #{tpu_custom_call.1} parent=31 // pred_check
          %p165 = pneg %p41
        $region34: #{tpu_custom_call.1} parent=31 // pred_check_branch
          %167 = sbr.rel (%p165) target = $region36
        $region35: #{tpu_custom_call.1} parent=31 // pred_region
          %168 = dma.done %s161, 256
        $region36: #{tpu_custom_call.1} parent=31 // pred_fallthru
          _
        %s169 = sand.u32 %s28, 1
        %s170 = scalar_lea.sflag [#allocation3], %s169
        %s171 = sand.u32 %s28, 1
        %s172 = smul.addr %s171, 16
        %s173 = scalar_lea.vmem [#allocation2], %s172
        %p174 = pneg %p41
        %p175 = pneg %p38
        %p176 = pneg %p62
        %p177 = pneg %p59
        %p178 = pneg %p83
        %p179 = pneg %p80
        %p180 = pneg %p109
        %p181 = pneg %p106
        %s182 = sand.u32 %s96, 1
        %s183 = scalar_lea.sflag [#allocation4], %s182
        %s184 = sand.u32 %s96, 1
        %s185 = smul.addr %s184, 16
        %s186 = scalar_lea.vmem [#allocation5], %s185
        %v187 = vld [vmem:[%s164] sm:$0xff]
        %v188 = vld [vmem:[%s164 + $0x8] sm:$0xff]
        %v189 = vmul.f32 %v187, %v187
        %v190 = vmul.f32 %v188, %v188
        %vm191 = vcmask 523264
        %v192 = vsel %vm191, %v190, 0.0
        %v193 = vadd.f32 %v189, %v192
        %194 = vadd.xlane.f32.xlu0 %v193
        %v195 = vpop.xlane.xlu0 %194
        %v196 = vrsqrt.pop %v195
        %v197 = vmul.f32 %v195, %v196
        %vm198 = vcmp.eq.f32.partialorder %v195, inf
        %v199 = vsel %vm198, %v195, %v197
        %vm200 = vcmp.eq.f32.partialorder %v195, 0.0
        %v201 = vand.u32 %v195, 2147483648
        %v202 = vsel %vm200, %v201, %v199
        %v203 = vrot.slane %v202, 4
        %v204 = vadd.f32 %v202, %v203
        %v205 = vrot.slane %v204, 2
        %v206 = vadd.f32 %v204, %v205
        %v207 = vrot.slane %v206, 1
        %v208 = vadd.f32 %v206, %v207
        %v209 = vrcp.pop 8.0
        %v210 = vmul.f32 %v208, %v209
        %v211 = vadd.f32 %v210, 1e-06
        %v212 = vrcp.pop %v211
        %v213 = vmul.f32 %v202, %v212
        %v214 = vld [vmem:[%s1] sm:$0xff]
        %v215 = vmul.f32 %v214, %v213
        %v216 = vadd.f32 %v215, 1.0
        %v217 = vld [vmem:[%s2] sm:$0xff]
        %219 = vset.pattern.permute.xlu0 0
        %220 = vperm.xlu0 %219, %v216
        %v221 = vpop.permute.xlu0 %220
        %v223 = vmul.f32 %v187, %v221
        %v224 = vmul.f32 %v188, %v221
        %226 = vset.pattern.permute.xlu0 0
        %227 = vperm.xlu0 %226, %v217
        %v228 = vpop.permute.xlu0 %227
        %v230 = vadd.f32 %v223, %v228
        %v231 = vadd.f32 %v224, %v228
        %232 = vst [vmem:[%s186] sm:$0xff] %v230
        %233 = vst.msk [vmem:[%s186 + $0x8] sm:$0xff] %vm191, %v231
        %s234 = sand.u32 %s96, 1
        %s235 = scalar_lea.sflag [#allocation4], %s234
        %s236 = sand.u32 %s96, 1
        %s237 = smul.addr %s236, 16
        %s238 = scalar_lea.vmem [#allocation5], %s237
        // Predicated region
        $region37: #{tpu_custom_call.1} parent=31 // pred_check
          %p239 = pneg %p106
        $region38: #{tpu_custom_call.1} parent=31 // pred_check_branch
          %241 = sbr.rel (%p239) target = $region40
        $region39: #{tpu_custom_call.1} parent=31 // pred_region
          %s243 = ssub.s32 256, 256
          %244 = vsyncadd %s235, %s243
          %s245 = smul.addr %s20, 2
          %s246 = smul.addr %s245, 128
          %s247 = scalar_lea.hbm %s3, %s246
          %s249 = sshll.u32 %s238, 4
          %s250 = int_to_ptr.vmem [resolvable:$true] %s249
          %252 = dma.vmem_to_hbm [thread:$0]  %s250, 256, %s247, %s235
        $region40: #{tpu_custom_call.1} parent=31 // pred_fallthru
          _
      $region32: #{tpu_custom_call.1} parent=5 // pred_fallthru
        _
      %p253 = scmp.le.s32.totalorder 2, %s15
      // Predicated region
      $region41: #{tpu_custom_call.1} parent=5 // pred_check
        %p254 = pneg %p253
      $region42: #{tpu_custom_call.1} parent=5 // pred_check_branch
        %256 = sbr.rel (%p254) target = $region44
      $region43: #{tpu_custom_call.1} parent=5 // pred_region
        %s257 = ssub.s32 %s15, 2
        // Predicated region
        $region45: #{tpu_custom_call.1} parent=43 // pred_check
          %p258 = pneg %p112
        $region46: #{tpu_custom_call.1} parent=43 // pred_check_branch
          %260 = sbr.rel (%p258) target = $region48
        $region47: #{tpu_custom_call.1} parent=43 // pred_region
          %s261 = sand.u32 %s97, 1
          %s262 = scalar_lea.sflag [#allocation4], %s261
          %s263 = sand.u32 %s97, 1
          %s264 = smul.addr %s263, 16
          %s265 = scalar_lea.vmem [#allocation5], %s264
          %266 = dma.done %s262, 256
        $region48: #{tpu_custom_call.1} parent=43 // pred_fallthru
          _
      $region44: #{tpu_custom_call.1} parent=5 // pred_fallthru
        _
    $region6: #{tpu_custom_call.1} parent=1 // loop_footer
      %s19 = sadd.s32 1, %s15
    $region7: #{tpu_custom_call.1} parent=1 // loop_footer_branch
      %14 = sbr.rel target = $region3
    $region8: #{tpu_custom_call.1} parent=1 // loop_exit
      _
    %267 = vsyncpa [#allocation3], 1
    %s268 = scalar_lea.sflag [#allocation3], 1
    %269 = vsyncpa %s268, 1
    %270 = vsyncpa [#allocation4], 1
    %s271 = scalar_lea.sflag [#allocation4], 1
    %272 = vsyncpa %s271, 1

</llo_original>
